<compile_context>
chip_gen: v7x
topology: tpu7x:2x2x1
jax: 0.10.0
libtpu: 0.0.40
codegen_flags: <defaults>
</compile_context>

<pallas_src>
import functools

import jax
import jax.numpy as jnp
from jax.experimental import pallas as pl
from jax.experimental.pallas import tpu as pltpu


def _round_up(v: int, m: int) -> int:
    return ((v + m - 1) // m) * m


def qnn_kernel(x_ref, w_ref, fcw_ref, fcb_ref, o_ref, *, compute_dtype):
    """x_ref: (N, TB) f32 VMEM (features on sublanes, batch on lanes);
    w_ref, fcw_ref: (N, 1) f32 VMEM; fcb_ref: (1,) f32 SMEM; o_ref: (1, TB)."""
    n = x_ref.shape[0]

    # Per-qubit <Z> factor before the CNOT chain: cos(x_j + w_j), computed on
    # the full (N, TILE_B) tile.  Optional bf16 transcendental path (v6e/v7x).
    theta = x_ref[...] + w_ref[...]                        # (N, TB) f32
    if compute_dtype == jnp.float32:
        c = jnp.cos(theta)
    else:
        c = jnp.cos(theta.astype(compute_dtype)).astype(jnp.float32)

    # Inclusive prefix product along the feature (sublane) axis via
    # Hillis-Steele: log2(N) masked sublane rolls (XLU), mask is a tiny (N, 1)
    # column broadcast across lanes (no full-tile iota materialized).
    row = jax.lax.broadcasted_iota(jnp.int32, (n, 1), 0)   # (N, 1)
    shift = 1
    while shift < n:
        rolled = pltpu.roll(c, shift=shift, axis=0)        # row i <- row i-shift
        c = c * jnp.where(row >= shift, rolled, 1.0)       # identity for wrapped rows
        shift *= 2
    # Now c[i, b] = prod_{j<=i} cos(theta_j[b]) = <Z_i> for batch element b.

    # fc layer fused as a weighted cross-sublane reduction, then bias.
    z = jnp.sum(c * fcw_ref[...], axis=0, keepdims=True) + fcb_ref[0]   # (1, TB)

    # Exact sigmoid (no approximate reciprocal).
    o_ref[...] = 1.0 / (1.0 + jnp.exp(-z))


@functools.partial(jax.jit, static_argnames=("tile_b", "compute_dtype"))
def qnn_model_forward_feature_major(x_fm, qnn_weights, fc_weight, fc_bias, *,
                                    tile_b=16384, compute_dtype=jnp.float32):
    """Forward pass on feature-major activations.

    x_fm: (N, B); qnn_weights: (N,); fc_weight: (1, N); fc_bias: (1,).
    Returns (B, 1) float32 — identical math to QNNModel.forward, with the
    batch/feature axes of the input swapped so no layout pass is needed.
    """
    N, B = x_fm.shape

    # Lane-dense tile (multiple of 128), as large as requested, but capped so
    # the grid has >= 2 steps when B allows it -> the "parallel" axis can
    # shard across both v7x TensorCores.  Costs at most one extra ~0.35us grid
    # step on single-core chips.
    tb = max(128, min(_round_up(tile_b, 128), _round_up(pl.cdiv(B, 2), 128)))
    n_tiles = pl.cdiv(B, tb)   # ragged last block is masked by Pallas; no pad.

    kernel = functools.partial(qnn_kernel, compute_dtype=compute_dtype)
    out_row = pl.pallas_call(
        kernel,
        out_shape=jax.ShapeDtypeStruct((1, B), jnp.float32),
        grid_spec=pl.GridSpec(
            grid=(n_tiles,),
            in_specs=[
                pl.BlockSpec((N, tb), lambda i: (0, i)),            # activations
                pl.BlockSpec((N, 1), lambda i: (0, 0)),             # qnn weights
                pl.BlockSpec((N, 1), lambda i: (0, 0)),             # fc weight col
                pl.BlockSpec(memory_space=pltpu.MemorySpace.SMEM),  # fc bias
            ],
            out_specs=pl.BlockSpec((1, tb), lambda i: (0, i)),
        ),
        compiler_params=pltpu.CompilerParams(
            dimension_semantics=("parallel",),
        ),
    )(
        x_fm.astype(jnp.float32),
        qnn_weights.reshape(N, 1).astype(jnp.float32),
        fc_weight.reshape(N, 1).astype(jnp.float32),
        fc_bias.reshape(1).astype(jnp.float32),
    )
    # (1, B) -> (B, 1): identical element order, plain reshape (no transpose).
    return out_row.reshape(B, 1)


@functools.partial(jax.jit, static_argnames=("tile_b", "compute_dtype"))
def qnn_model_forward(x, qnn_weights, fc_weight, fc_bias, *,
                      tile_b=16384, compute_dtype=jnp.float32):
    """Drop-in equivalent of QNNModel.forward: x is batch-major (B, N).

    The only extra work vs. the feature-major entry point is the one-time
    layout pass x -> x.T; producers that can emit (N, B) activations should
    call qnn_model_forward_feature_major directly and skip it.
    """
    return qnn_model_forward_feature_major(
        x.T, qnn_weights, fc_weight, fc_bias,
        tile_b=tile_b, compute_dtype=compute_dtype)


def qnn_model_reference(x, qnn_weights, fc_weight, fc_bias):
    """Pure-JAX reference of the same math (batch-major x: (B, N))."""
    c = jnp.cos(x + qnn_weights[None, :])
    expvals = jnp.cumprod(c, axis=-1)
    logits = expvals @ fc_weight.T + fc_bias
    return jax.nn.sigmoid(logits)


if __name__ == "__main__":
    input_size = 8   # number of qubits / features (QNNModel(input_size))
    batch = 8

    key = jax.random.PRNGKey(0)
    kx, kw, kfw, kfb, kx2 = jax.random.split(key, 5)

    # Parameters (shapes from __init__): qnn weights (N,), fc = Linear(N, 1).
    qnn_weights = jax.random.uniform(
        kw, (input_size,), dtype=jnp.float32, minval=0.0, maxval=2.0 * jnp.pi)
    fc_weight = jax.random.normal(kfw, (1, input_size), dtype=jnp.float32) * 0.1
    fc_bias = jax.random.normal(kfb, (1,), dtype=jnp.float32) * 0.1

    # --- 1. Feature-major path (no layout pass), small batch, ragged block ---
    x_fm = jax.random.normal(kx, (input_size, batch), dtype=jnp.float32)  # (N, B)
    out = jax.block_until_ready(
        qnn_model_forward_feature_major(x_fm, qnn_weights, fc_weight, fc_bias))
    ref = qnn_model_reference(x_fm.T, qnn_weights, fc_weight, fc_bias)
    assert out.shape == (batch, 1)
    assert jnp.allclose(out, ref, atol=1e-5, rtol=1e-5), (out, ref)

    # --- 2. Batch-major drop-in path, multi-step grid + ragged last block ---
    batch2 = 389
    x2 = jax.random.normal(kx2, (batch2, input_size), dtype=jnp.float32)  # (B, N)
    out2 = jax.block_until_ready(
        qnn_model_forward(x2, qnn_weights, fc_weight, fc_bias))
    ref2 = qnn_model_reference(x2, qnn_weights, fc_weight, fc_bias)
    assert out2.shape == (batch2, 1)
    assert jnp.allclose(out2, ref2, atol=1e-5, rtol=1e-5), (out2, ref2)

    # --- 3. Optional bf16-cos path (v6e / v7x EUP throughput); smoke-checked
    #        with a loose bound since bf16 trades ~1e-2 accuracy by design. ---
    kind = jax.devices()[0].device_kind.lower()
    if any(tag in kind for tag in ("v6", "v7", "7x")):
        out_bf = jax.block_until_ready(
            qnn_model_forward(x2, qnn_weights, fc_weight, fc_bias,
                              compute_dtype=jnp.bfloat16))
        assert jnp.all(jnp.isfinite(out_bf))
        assert jnp.max(jnp.abs(out_bf - ref2)) < 1e-1

    print("KERNEL_OK")
</pallas_src>

<mosaic_0001>
module attributes {stable_mosaic.version = 11 : i64} {
  func.func @qnn_kernel(%arg0: i32, %arg1: memref<8x128xf32, #tpu.memory_space<vmem>>, %arg2: memref<8x1xf32, #tpu.memory_space<vmem>>, %arg3: memref<8x1xf32, #tpu.memory_space<vmem>>, %arg4: memref<1xf32, #tpu.memory_space<smem>>, %arg5: memref<1x128xf32, #tpu.memory_space<vmem>>) attributes {dimension_semantics = [#tpu.dimension_semantics<parallel>], iteration_bounds = array<i64: 1>, scalar_prefetch = 0 : i64, scratch_operands = 0 : i64, tpu.core_type = #tpu.core_type<tc>, window_params = [{transform_indices = @transform_0, window_bounds = array<i64: 8, 128>}, {pipeline_mode = #tpu.pipeline_mode<synchronous>, transform_indices = @transform_1, window_bounds = array<i64: 8, 1>}, {pipeline_mode = #tpu.pipeline_mode<synchronous>, transform_indices = @transform_2, window_bounds = array<i64: 8, 1>}, {transform_indices = @transform_3, window_bounds = array<i64: 1>}, {transform_indices = @transform_4, window_bounds = array<i64: 1, 128>}]} {
    %c0 = arith.constant 0 : index
    %c0_0 = arith.constant 0 : index
    %0 = vector.load %arg1[%c0, %c0_0] : memref<8x128xf32, #tpu.memory_space<vmem>>, vector<8x128xf32>
    %c0_1 = arith.constant 0 : index
    %c0_2 = arith.constant 0 : index
    %1 = vector.load %arg2[%c0_1, %c0_2] : memref<8x1xf32, #tpu.memory_space<vmem>>, vector<8x1xf32>
    %2 = vector.broadcast %1 : vector<8x1xf32> to vector<8x128xf32>
    %3 = arith.addf %0, %2 : vector<8x128xf32>
    %4 = math.cos %3 : vector<8x128xf32>
    %5 = tpu.iota {dimensions = array<i32: 0>} : vector<8x1xi32>
    %c1_i32 = arith.constant 1 : i32
    %6 = tpu.dynamic_rotate %4 by %c1_i32 dim 0 : vector<8x128xf32>, i32 -> vector<8x128xf32>
    %c1_i32_3 = arith.constant 1 : i32
    %7 = vector.broadcast %c1_i32_3 : i32 to vector<8x1xi32>
    %8 = arith.cmpi sge, %5, %7 : vector<8x1xi32>
    %cst = arith.constant 1.000000e+00 : f32
    %9 = vector.shape_cast %8 : vector<8x1xi1> to vector<8x1xi1>
    %10 = vector.broadcast %9 : vector<8x1xi1> to vector<8x128xi1>
    %11 = vector.broadcast %cst : f32 to vector<8x128xf32>
    %12 = arith.select %10, %6, %11 : vector<8x128xi1>, vector<8x128xf32>
    %13 = arith.mulf %4, %12 : vector<8x128xf32>
    %c2_i32 = arith.constant 2 : i32
    %14 = tpu.dynamic_rotate %13 by %c2_i32 dim 0 : vector<8x128xf32>, i32 -> vector<8x128xf32>
    %c2_i32_4 = arith.constant 2 : i32
    %15 = vector.broadcast %c2_i32_4 : i32 to vector<8x1xi32>
    %16 = arith.cmpi sge, %5, %15 : vector<8x1xi32>
    %cst_5 = arith.constant 1.000000e+00 : f32
    %17 = vector.shape_cast %16 : vector<8x1xi1> to vector<8x1xi1>
    %18 = vector.broadcast %17 : vector<8x1xi1> to vector<8x128xi1>
    %19 = vector.broadcast %cst_5 : f32 to vector<8x128xf32>
    %20 = arith.select %18, %14, %19 : vector<8x128xi1>, vector<8x128xf32>
    %21 = arith.mulf %13, %20 : vector<8x128xf32>
    %c4_i32 = arith.constant 4 : i32
    %22 = tpu.dynamic_rotate %21 by %c4_i32 dim 0 : vector<8x128xf32>, i32 -> vector<8x128xf32>
    %c4_i32_6 = arith.constant 4 : i32
    %23 = vector.broadcast %c4_i32_6 : i32 to vector<8x1xi32>
    %24 = arith.cmpi sge, %5, %23 : vector<8x1xi32>
    %cst_7 = arith.constant 1.000000e+00 : f32
    %25 = vector.shape_cast %24 : vector<8x1xi1> to vector<8x1xi1>
    %26 = vector.broadcast %25 : vector<8x1xi1> to vector<8x128xi1>
    %27 = vector.broadcast %cst_7 : f32 to vector<8x128xf32>
    %28 = arith.select %26, %22, %27 : vector<8x128xi1>, vector<8x128xf32>
    %29 = arith.mulf %21, %28 : vector<8x128xf32>
    %c0_8 = arith.constant 0 : index
    %c0_9 = arith.constant 0 : index
    %30 = vector.load %arg3[%c0_8, %c0_9] : memref<8x1xf32, #tpu.memory_space<vmem>>, vector<8x1xf32>
    %31 = vector.broadcast %30 : vector<8x1xf32> to vector<8x128xf32>
    %32 = arith.mulf %29, %31 : vector<8x128xf32>
    %cst_10 = arith.constant dense<0.000000e+00> : vector<128xf32>
    %33 = vector.multi_reduction <add>, %32, %cst_10 [0] : vector<8x128xf32> to vector<128xf32>
    %34 = vector.shape_cast %33 : vector<128xf32> to vector<1x128xf32>
    %c0_11 = arith.constant 0 : index
    %35 = memref.load %arg4[%c0_11] : memref<1xf32, #tpu.memory_space<smem>>
    %36 = vector.broadcast %35 : f32 to vector<1x128xf32>
    %37 = arith.addf %34, %36 : vector<1x128xf32>
    %cst_12 = arith.constant 0.000000e+00 : f32
    %38 = vector.broadcast %cst_12 : f32 to vector<1x128xf32>
    %39 = arith.subf %38, %37 : vector<1x128xf32>
    %40 = math.exp %39 : vector<1x128xf32>
    %cst_13 = arith.constant 1.000000e+00 : f32
    %41 = vector.broadcast %cst_13 : f32 to vector<1x128xf32>
    %42 = arith.addf %41, %40 : vector<1x128xf32>
    %cst_14 = arith.constant 1.000000e+00 : f32
    %43 = vector.broadcast %cst_14 : f32 to vector<1x128xf32>
    %44 = arith.divf %43, %42 : vector<1x128xf32>
    %c0_15 = arith.constant 0 : index
    %c0_16 = arith.constant 0 : index
    %45 = vector.load %arg5[%c0_15, %c0_16] : memref<1x128xf32, #tpu.memory_space<vmem>>, vector<1x128xf32>
    tpu.vector_store %arg5[%c0_15, %c0_16], %44 {strides = array<i32>} : memref<1x128xf32, #tpu.memory_space<vmem>>, vector<1x128xf32>,
    return
  }
  func.func @transform_0(%arg0: i32) -> (i32, i32) {
    %c0_i32 = arith.constant 0 : i32
    %c0_i32_0 = arith.constant 0 : i32
    return %c0_i32, %arg0 : i32, i32
  }
  func.func @transform_1(%arg0: i32) -> (i32, i32) {
    %c0_i32 = arith.constant 0 : i32
    %c0_i32_0 = arith.constant 0 : i32
    %c0_i32_1 = arith.constant 0 : i32
    return %c0_i32, %c0_i32_0 : i32, i32
  }
  func.func @transform_2(%arg0: i32) -> (i32, i32) {
    %c0_i32 = arith.constant 0 : i32
    %c0_i32_0 = arith.constant 0 : i32
    %c0_i32_1 = arith.constant 0 : i32
    return %c0_i32, %c0_i32_0 : i32, i32
  }
  func.func @transform_3(%arg0: i32) -> i32 {
    %c0_i32 = arith.constant 0 : i32
    %c0_i32_0 = arith.constant 0 : i32
    return %c0_i32 : i32
  }
  func.func @transform_4(%arg0: i32) -> (i32, i32) {
    %c0_i32 = arith.constant 0 : i32
    %c0_i32_0 = arith.constant 0 : i32
    return %c0_i32, %arg0 : i32, i32
  }
}

</mosaic_0001>

<llo_original>
// kernel: qnn_model_forward_feature_major.1
$region0: #{qnn_model_forward_feature_major.1}
  #allocation0 [shape = 'u32[]', space=smem, size = 0x4, offset = 0x4, fixed_abs, tag = 'smem constant byte address 0x4 - core index']
  #allocation1 [shape = 'u32[144,128]{1,0:T(1,128)}', space=vmem, size = 0x12000, scoped, tag = 'internal scratch']
  #allocation2 [shape = 'f32[1]{0:T(128)S(6)}', space=smem, size = 0x200, scoped, tag = 'scoped memory for qnn_model_forward_feature_major.1']
  %s0 = inlined_call_operand.vmem [shape: f32[8,8], index: 0, kind: input, shape index: {}]
  %s1 = inlined_call_operand.vmem [shape: f32[8,1], index: 1, kind: input, shape index: {}]
  %s2 = inlined_call_operand.vmem [shape: f32[8,1], index: 2, kind: input, shape index: {}]
  %s3 = inlined_call_operand.<no memory space> [shape: f32[1], index: 3, kind: input, shape index: {}]
  %s4 = inlined_call_operand.hbm [shape: f32[1,8], index: 4, kind: output, shape index: {}]
  %s5 = sld [smem:[#allocation0]]
  $region26: #{qnn_model_forward_feature_major.1} parent=0
    _
  %s7 = ssub.s32 1, %s5
  %s8 = scalar_select 0, %s7, %s5
  %9 = sst [smem:[#allocation2]] %s3
  $region1: #{qnn_model_forward_feature_major.1} parent=0
    #allocation3 [shape = 'u8[512]{0}', space=vmem, size = 0x400, scoped, tag = 'output window, operand 0, single buffered']
    #allocation4 [shape = 's32[1]{0}', space=sflag, size = 0x4, scoped, tag = 'scoped memory for qnn_model_forward_feature_major.1']
    %10 = vsyncpa [#allocation4], 0
    // Predicated region
    $region2: #{qnn_model_forward_feature_major.1} parent=1 // pred_check
      _
    $region3: #{qnn_model_forward_feature_major.1} parent=1 // pred_check_branch
      %12 = sbr.rel (0) target = $region5
    $region4: #{qnn_model_forward_feature_major.1} parent=1 // pred_region
      _
    $region5: #{qnn_model_forward_feature_major.1} parent=1 // pred_fallthru
      _
    // Predicated region
    $region6: #{qnn_model_forward_feature_major.1} parent=1 // pred_check
      _
    $region7: #{qnn_model_forward_feature_major.1} parent=1 // pred_check_branch
      %14 = sbr.rel (0) target = $region9
    $region8: #{qnn_model_forward_feature_major.1} parent=1 // pred_region
      _
    $region9: #{qnn_model_forward_feature_major.1} parent=1 // pred_fallthru
      _
    // Predicated region
    $region10: #{qnn_model_forward_feature_major.1} parent=1 // pred_check
      _
    $region11: #{qnn_model_forward_feature_major.1} parent=1 // pred_check_branch
      %16 = sbr.rel (0) target = $region13
    $region12: #{qnn_model_forward_feature_major.1} parent=1 // pred_region
      _
    $region13: #{qnn_model_forward_feature_major.1} parent=1 // pred_fallthru
      _
    // Predicated region
    $region14: #{qnn_model_forward_feature_major.1} parent=1 // pred_check
      _
    $region15: #{qnn_model_forward_feature_major.1} parent=1 // pred_check_branch
      %18 = sbr.rel (0) target = $region17
    $region16: #{qnn_model_forward_feature_major.1} parent=1 // pred_region
      _
    $region17: #{qnn_model_forward_feature_major.1} parent=1 // pred_fallthru
      _
    %v19 = vld [vmem:[%s0] sm:$0xff]
    %v20 = vld [vmem:[%s1] sm:$0xff]
    %22 = vset.pattern.permute.xlu0 0
    %23 = vperm.xlu0 %22, %v20
    %v24 = vpop.permute.xlu0 %23
    %v26 = vadd.f32 %v19, %v24
    %v27 = vand.u32 2147483647, %v26
    %vm28 = vcmp.le.f32.partialorder %v27, 0.7853982
    %vm29 = vcmp.lt.s32.totalorder %v26, 0
    %v30 = vand.u32 %v26, 2139095040
    %v31 = vshrl.u32 %v30, 23
    %v32 = vsub.s32 %v31, 127
    %v33 = vand.u32 2147483647, %v26
    %v34 = vand.u32 %v33, 8388607
    %v35 = vor.u32 %v34, 8388608
    %v36 = vsub.s32 0, %v35
    %v37 = vadd.s32 %v32, 1
    %vm38 = vcmp.gt.s32.totalorder %v37, 0
    %v39 = vsel %vm38, %v37, 0
    %v40 = vshrl.u32 %v39, 5
    %v41 = vand.u32 %v39, 31
    %v42 = vsub.s32 32, %v41
    %v43 = vshrl.u32 683565275, %v42
    %v44 = vshll.u32 683565275, %v41
    %v45 = vshrl.u32 2475754826, %v42
    %v46 = vor.u32 %v44, %v45
    %v47 = vshll.u32 2475754826, %v41
    %v48 = vshrl.u32 2131351028, %v42
    %v49 = vor.u32 %v47, %v48
    %v50 = vshll.u32 2131351028, %v41
    %v51 = vshrl.u32 2102212464, %v42
    %v52 = vor.u32 %v50, %v51
    %v53 = vshll.u32 2102212464, %v41
    %v54 = vshrl.u32 920167782, %v42
    %v55 = vor.u32 %v53, %v54
    %v56 = vshll.u32 920167782, %v41
    %v57 = vshrl.u32 1326507024, %v42
    %v58 = vor.u32 %v56, %v57
    %vm59 = vcmp.lt.s32.totalorder %v40, 1
    %vm60 = vcmp.lt.s32.totalorder %v40, 2
    %vm61 = vcmp.lt.s32.totalorder %v40, 3
    %vm62 = vcmp.lt.s32.totalorder %v40, 4
    %v63 = vsel %vm59, %v43, %v46
    %v64 = vsel %vm62, %v52, 2102212464
    %v65 = vsel %vm61, %v49, %v64
    %v66 = vsel %vm60, %v63, %v65
    %v67 = vsel %vm59, %v46, %v49
    %v68 = vsel %vm62, %v55, 920167782
    %v69 = vsel %vm61, %v52, %v68
    %v70 = vsel %vm60, %v67, %v69
    %v71 = vsel %vm59, %v49, %v52
    %v72 = vsel %vm62, %v58, 1326507024
    %v73 = vsel %vm61, %v55, %v72
    %v74 = vsel %vm60, %v71, %v73
    %v75 = vshll.u32 %v35, 8
    %v76 = vmul.u32.u64.compose %v75, %v74
    %v77 = vextract.low.u32 %v76
    %v78 = vextract.high.u32 %v76
    %v79 = vmul.u32.u64.compose %v75, %v70
    %v80 = vextract.low.u32 %v79
    %v81 = vextract.high.u32 %v79
    %v82 = vmul.u32 %v75, %v66
    %v83 = vadd.s32 %v78, %v80
    %vm84 = vc.u32 %v78, %v80
    %v85 = vadd.s32 %v81, 1
    %v86 = vsel %vm84, %v85, %v81
    %v87 = vadd.s32 %v82, %v86
    %v88 = vadd.s32 %v87, 536870912
    %v89 = vshrl.u32 %v88, 30
    %v90 = vshll.u32 %v89, 30
    %v91 = vsub.s32 %v87, %v90
    %vm92 = vcmp.lt.s32.totalorder %v91, 0
    %v93 = vsub.s32 0, %v91
    %v94 = vsel %vm92, %v93, %v91
    %v95 = vclz %v94
    %v96 = vsub.s32 %v95, 2
    %vm97 = vcmp.gt.s32.totalorder 0, %v96
    %v98 = vsel %vm97, 0, %v96
    %v99 = vsub.s32 32, %v98
    %v100 = vshll.u32 %v91, %v98
    %v101 = vshrl.u32 %v83, %v99
    %v102 = vor.u32 %v100, %v101
    %v103 = vsub.s32 4294967266, %v98
    %v104 = vadd.s32 %v103, 127
    %v105 = vshll.u32 %v104, 23
    %v106 = vor.u32 4788187, %v105
    %v107 = vand.u32 2147483647, %v106
    %v109 = vcvt.s32.f32 %v102
    %v110 = vmul.f32 %v109, %v107
    %v111 = vxor.u32 %v110, 2147483648
    %v112 = vsel %vm29, %v111, %v110
    %v113 = vsub.s32 4, %v89
    %v114 = vsel %vm29, %v113, %v89
    %v115 = vsel %vm28, %v26, %v112
    %v116 = vsel %vm28, 0, %v114
    %v117 = vcosq.f32.pop %v115
    %v118 = vsinq.f32.pop %v115
    %vm119 = vweird.f32 %v26
    %v120 = vand.u32 %v116, 3
    %vm121 = vcmp.lt.s32.totalorder %v120, 2
    %vm122 = vcmp.eq.s32.totalorder %v120, 0
    %v123 = vxor.u32 %v118, 2147483648
    %v124 = vsel %vm122, %v117, %v123
    %vm125 = vcmp.eq.s32.totalorder %v120, 2
    %v126 = vxor.u32 %v117, 2147483648
    %v127 = vsel %vm125, %v126, %v118
    %v128 = vsel %vm121, %v124, %v127
    %v129 = vsel %vm119, nan, %v128
    %v130 = vlaneseq
    %v131 = vshrl.u32 %v130, 7
    %v132 = vrot.slane %v129, 7
    %vm133 = vcmp.ge.s32.totalorder %v131, 1
    %v134 = vsel %vm133, 1, 0
    %vm135 = vcmp.eq.s32.totalorder %v134, 1
    %v136 = vsel %vm135, %v132, 1.0
    %v137 = vmul.f32 %v129, %v136
    %v138 = vrot.slane %v137, 6
    %vm139 = vcmp.ge.s32.totalorder %v131, 2
    %v140 = vsel %vm139, 1, 0
    %vm141 = vcmp.eq.s32.totalorder %v140, 1
    %v142 = vsel %vm141, %v138, 1.0
    %v143 = vmul.f32 %v137, %v142
    %v144 = vrot.slane %v143, 4
    %vm145 = vcmp.ge.s32.totalorder %v131, 4
    %v146 = vsel %vm145, 1, 0
    %vm147 = vcmp.eq.s32.totalorder %v146, 1
    %v148 = vsel %vm147, %v144, 1.0
    %v149 = vmul.f32 %v143, %v148
    %v150 = vld [vmem:[%s2] sm:$0xff]
    %152 = vset.pattern.permute.xlu0 0
    %153 = vperm.xlu0 %152, %v150
    %v154 = vpop.permute.xlu0 %153
    %v156 = vmul.f32 %v149, %v154
    %v157 = vrot.slane %v156, 4
    %v158 = vadd.f32 %v156, %v157
    %v159 = vrot.slane %v158, 2
    %v160 = vadd.f32 %v158, %v159
    %v161 = vrot.slane %v160, 1
    %v162 = vadd.f32 %v160, %v161
    %s163 = sld [smem:[#allocation2]]
    %v164 = vstv %s163
    %v165 = vadd.f32 %v162, %v164
    %v166 = vsub.f32 0.0, %v165
    %v167 = vmul.f32 %v166, 1.442695
    %v168 = vpow.pop %v167
    %v169 = vadd.f32 %v168, 1.0
    %v170 = vrcp.pop %v169
    %v171 = vmul.f32 1.0, %v170
    %172 = vst [vmem:[#allocation3] sm:$0x1] %v171
    // Predicated region
    $region18: #{qnn_model_forward_feature_major.1} parent=1 // pred_check
      _
    $region19: #{qnn_model_forward_feature_major.1} parent=1 // pred_check_branch
      %174 = sbr.rel (0) target = $region21
    $region20: #{qnn_model_forward_feature_major.1} parent=1 // pred_region
      %s176 = ssub.s32 16, 16
      %177 = vsyncadd [#allocation4], %s176
      %s179 = sshll.u32 [#allocation3], 4
      %s180 = int_to_ptr.vmem [resolvable:$true] %s179
      %182 = dma.vmem_to_hbm [thread:$0]  %s180, 16, %s4, [#allocation4]
    $region21: #{qnn_model_forward_feature_major.1} parent=1 // pred_fallthru
      _
    // Predicated region
    $region22: #{qnn_model_forward_feature_major.1} parent=1 // pred_check
      _
    $region23: #{qnn_model_forward_feature_major.1} parent=1 // pred_check_branch
      %184 = sbr.rel (0) target = $region25
    $region24: #{qnn_model_forward_feature_major.1} parent=1 // pred_region
      %185 = dma.done [#allocation4], 16
    $region25: #{qnn_model_forward_feature_major.1} parent=1 // pred_fallthru
      _
    %186 = vsyncpa [#allocation4], 1

</llo_original>
